<compile_context>
chip_gen: v5e
topology: v5e:2x2
jax: 0.10.0
libtpu: 0.0.40
codegen_flags: <defaults>
</compile_context>

<pallas_src>
import functools
from typing import Optional

import jax
import jax.numpy as jnp
from jax import lax
from jax.experimental import pallas as pl
from jax.experimental.pallas import tpu as pltpu


# --------------------------------------------------------------------------- #
# Kernel body
# --------------------------------------------------------------------------- #
def _kernel_body(*refs, metric: str, gamma: float, coef0: float,
                 degree: float, int_degree: Optional[int]):
    """One (tm, tn) output tile; grid is (i, j, k) with k the D-reduction axis.

    refs (rbf):     xn_ref (tm,1), yn_ref (1,tn), x_ref (tm,tk), y_ref (tn,tk),
                    o_ref (tm,tn), acc_ref (tm,tn) f32 scratch
    refs (others):  x_ref, y_ref, o_ref, acc_ref
    """
    if metric == "rbf":
        xn_ref, yn_ref, x_ref, y_ref, o_ref, acc_ref = refs
    else:
        x_ref, y_ref, o_ref, acc_ref = refs
        xn_ref = yn_ref = None

    k = pl.program_id(2)

    @pl.when(k == 0)
    def _init():
        acc_ref[...] = jnp.zeros_like(acc_ref)

    # Contract on the last (feature) dims directly -> MXU, no y.T materialization.
    # Operands keep their native dtype (bf16 MXU path on v6e/v7x); acc is f32.
    acc_ref[...] += lax.dot_general(
        x_ref[...], y_ref[...],
        dimension_numbers=(((1,), (1,)), ((), ())),
        preferred_element_type=jnp.float32,
    )

    @pl.when(k == pl.num_programs(2) - 1)
    def _finalize():
        dots = acc_ref[...]
        if metric == "linear":
            out = dots
        elif metric in ("poly", "polynomial"):
            base = gamma * dots + coef0
            if int_degree is not None:
                # VPU multiplies; correct sign for negative bases (matches torch).
                out = lax.integer_pow(base, int_degree)
            else:
                out = base ** jnp.float32(degree)
        elif metric == "rbf":
            dists = jnp.maximum(xn_ref[...] + yn_ref[...] - 2.0 * dots, 0.0)
            out = jnp.exp(-gamma * dists)
        elif metric == "sigmoid":
            out = jnp.tanh(gamma * dots + coef0)
        else:
            raise ValueError(f"unsupported kernel metric: {metric}")
        o_ref[...] = out.astype(o_ref.dtype)


# --------------------------------------------------------------------------- #
# Tile selection helpers
# --------------------------------------------------------------------------- #
def _vmem_capacity_bytes() -> int:
    try:
        info = pltpu.get_tpu_info()
        cap = getattr(info, "vmem_capacity_bytes", None)
        if cap:
            return int(cap)
    except Exception:
        pass
    return 64 * 2 ** 20  # conservative fallback (v7x per-core VMEM)


def _pick_tile(dim: int, preferred: int, aligns) -> int:
    """Largest divisor of `dim` that is <= preferred and a multiple of an
    alignment in `aligns` (tried in order); falls back to the full dim."""
    for align in aligns:
        best = None
        t = align
        limit = min(dim, preferred)
        while t <= limit:
            if dim % t == 0:
                best = t
            t += align
        if best is not None:
            return best
    return dim


# --------------------------------------------------------------------------- #
# Wrapper (forward-pass semantics of sk2torch.kernel.Kernel)
# --------------------------------------------------------------------------- #
class PallasKernel:
    def __init__(self, metric: str, gamma: Optional[float] = None,
                 coef0: Optional[float] = None, degree: Optional[float] = None):
        if metric not in ["linear", "poly", "polynomial", "rbf", "sigmoid"]:
            raise ValueError(f"unsupported kernel metric: {metric}")
        self.metric = metric
        self.has_gamma = gamma is not None
        self.gamma = float(gamma or 0.0)
        self.has_coef0 = coef0 is not None
        self.coef0 = float(coef0 or 0.0)
        self.has_degree = degree is not None
        self.degree = float(degree or 0.0)

    # --- hyperparameter resolution (same defaults as the PyTorch reference) ---
    def _gamma(self, d: int) -> float:
        if self.has_gamma:
            return self.gamma
        if self.metric in ["rbf", "sigmoid", "poly", "polynomial"]:
            return 1.0 / d
        return 1.0  # unused for 'linear'

    def _coef0(self) -> float:
        if self.has_coef0:
            return self.coef0
        if self.metric in ["sigmoid", "poly", "polynomial"]:
            return 1.0
        return 0.0

    def _degree(self) -> float:
        if self.has_degree:
            return self.degree
        if self.metric in ["poly", "polynomial"]:
            return 3.0
        return 1.0

    # --- forward ---------------------------------------------------------------
    def __call__(self, x: jax.Array, y: jax.Array, *,
                 out_dtype=None, max_tk: int = 2048) -> jax.Array:
        N, D = x.shape
        M, Dy = y.shape
        assert D == Dy, "x and y must share the feature dimension"

        dtype = jnp.promote_types(x.dtype, y.dtype)
        x = x.astype(dtype)
        y = y.astype(dtype)
        if out_dtype is None:
            out_dtype = dtype

        in_bytes = jnp.dtype(dtype).itemsize
        out_bytes = jnp.dtype(out_dtype).itemsize
        is_rbf = self.metric == "rbf"

        # ---- tile selection -------------------------------------------------
        tk = D if D <= max_tk else _pick_tile(D, max_tk, aligns=(512, 128))
        tm = _pick_tile(N, 256, aligns=(128, 8))
        tn = _pick_tile(M, 512, aligns=(128,))

        vmem_cap = _vmem_capacity_bytes()
        vmem_limit = int(min(0.75 * vmem_cap, 100 * 2 ** 20))
        budget = int(0.6 * vmem_limit)

        def footprint(tm_, tn_, tk_):
            f = 2 * (tm_ * tk_ + tn_ * tk_) * in_bytes   # double-buffered inputs
            f += 2 * tm_ * tn_ * out_bytes               # double-buffered output
            f += tm_ * tn_ * 4                           # f32 accumulator
            if is_rbf:
                f += 2 * (tm_ + tn_) * 4                 # norm tiles
            return f

        while footprint(tm, tn, tk) > budget:
            if tn >= 256 and M % (tn // 2) == 0 and (tn // 2) % 128 == 0:
                tn //= 2
            elif tm >= 16 and N % (tm // 2) == 0 and (tm // 2) % 8 == 0:
                tm //= 2
            elif tk >= 256 and D % (tk // 2) == 0 and (tk // 2) % 128 == 0:
                tk //= 2
            else:
                break

        # Megacore (v7x): make sure the parallel axes give >= 2 grid steps
        # when it's cheap to do so.
        if (N // tm) * (M // tn) < 2:
            if tn >= 256 and M % (tn // 2) == 0 and (tn // 2) % 128 == 0:
                tn //= 2
            elif tm >= 256 and N % (tm // 2) == 0 and (tm // 2) % 8 == 0:
                tm //= 2

        grid = (N // tm, M // tn, D // tk)

        # ---- specs -----------------------------------------------------------
        x_spec = pl.BlockSpec((tm, tk), lambda i, j, k: (i, k))
        y_spec = pl.BlockSpec((tn, tk), lambda i, j, k: (j, k))
        o_spec = pl.BlockSpec((tm, tn), lambda i, j, k: (i, j))

        gamma = self._gamma(D)
        coef0 = self._coef0()
        degree = self._degree()
        int_degree = int(degree) if float(degree).is_integer() else None

        body = functools.partial(
            _kernel_body, metric=self.metric, gamma=gamma, coef0=coef0,
            degree=degree, int_degree=int_degree)

        if is_rbf:
            # Precompute norms once (f32), lane-friendly layouts; no per-tile
            # recompute / transpose inside the kernel.
            xf = x.astype(jnp.float32)
            yf = y.astype(jnp.float32)
            x_norm = jnp.sum(xf * xf, axis=-1, keepdims=True)      # (N, 1)
            y_norm = jnp.sum(yf * yf, axis=-1)[None, :]            # (1, M)
            in_specs = [
                pl.BlockSpec((tm, 1), lambda i, j, k: (i, 0)),
                pl.BlockSpec((1, tn), lambda i, j, k: (0, j)),
                x_spec, y_spec,
            ]
            args = (x_norm, y_norm, x, y)
        else:
            in_specs = [x_spec, y_spec]
            args = (x, y)

        flops = 2 * N * M * D
        if self.metric in ("rbf", "sigmoid"):
            transcendentals = N * M
        elif self.metric in ("poly", "polynomial") and int_degree is None:
            transcendentals = 2 * N * M
        else:
            transcendentals = 0
        bytes_accessed = (N * D * in_bytes
                          + (N // tm) * M * D * in_bytes
                          + N * M * out_bytes)
        cost = pl.CostEstimate(flops=int(flops),
                               transcendentals=int(transcendentals),
                               bytes_accessed=int(bytes_accessed))

        return pl.pallas_call(
            body,
            out_shape=jax.ShapeDtypeStruct((N, M), out_dtype),
            grid_spec=pltpu.PrefetchScalarGridSpec(
                num_scalar_prefetch=0,
                grid=grid,
                in_specs=in_specs,
                out_specs=o_spec,
                scratch_shapes=[pltpu.VMEM((tm, tn), jnp.float32)],
            ),
            compiler_params=pltpu.CompilerParams(
                dimension_semantics=("parallel", "parallel", "arbitrary"),
                vmem_limit_bytes=vmem_limit,
            ),
            cost_estimate=cost,
        )(*args)


# --------------------------------------------------------------------------- #
# Pure-JAX reference (mirrors the PyTorch module semantics)
# --------------------------------------------------------------------------- #
def _reference(metric, x, y, gamma, coef0, degree):
    x = x.astype(jnp.float32)
    y = y.astype(jnp.float32)
    d = x.shape[1]
    g = gamma if gamma is not None else 1.0 / d
    c = coef0 if coef0 is not None else 1.0
    p = degree if degree is not None else 3.0
    dots = x @ y.T
    if metric == "linear":
        return dots
    if metric in ("poly", "polynomial"):
        base = g * dots + c
        if float(p).is_integer():
            return lax.integer_pow(base, int(p))
        return base ** p
    if metric == "rbf":
        xn = jnp.sum(x * x, -1)[:, None]
        yn = jnp.sum(y * y, -1)[None]
        return jnp.exp(-g * jnp.maximum(xn + yn - 2 * dots, 0.0))
    if metric == "sigmoid":
        return jnp.tanh(g * dots + c)
    raise ValueError(metric)


def _check(out, ref, tol):
    out = jnp.asarray(out, jnp.float32)
    ref = jnp.asarray(ref, jnp.float32)
    err = float(jnp.max(jnp.abs(out - ref)))
    scale = 1.0 + float(jnp.max(jnp.abs(ref)))
    assert err / scale < tol, f"max abs err {err} (scale {scale})"


if __name__ == "__main__":
    key = jax.random.PRNGKey(0)
    kx, ky = jax.random.split(key)

    # Small shapes consistent with the module's (N, D) x (M, D) forward.
    N, M, D = 128, 256, 32
    x = jax.random.normal(kx, (N, D), dtype=jnp.float32)
    y = jax.random.normal(ky, (M, D), dtype=jnp.float32)

    configs = [
        ("linear", None, None, None),
        ("poly", 0.5, 1.5, 3.0),
        ("poly", 0.25, 0.5, 2.0),
        ("polynomial", None, None, None),   # defaults: gamma=1/D, coef0=1, degree=3
        ("rbf", 0.1, None, None),
        ("rbf", None, None, None),          # default gamma=1/D
        ("sigmoid", 0.05, 0.25, None),
    ]
    for metric, gamma, coef0, degree in configs:
        kern = PallasKernel(metric, gamma=gamma, coef0=coef0, degree=degree)
        out = jax.block_until_ready(kern(x, y))
        assert out.shape == (N, M), (metric, out.shape)
        _check(out, _reference(metric, x, y, gamma, coef0, degree), 1e-4)

    # Exercise the D-reduction (K grid axis) path with a larger feature dim.
    D2 = 512
    kx2, ky2 = jax.random.split(jax.random.PRNGKey(1))
    x2 = jax.random.normal(kx2, (N, D2), dtype=jnp.float32)
    y2 = jax.random.normal(ky2, (M, D2), dtype=jnp.float32)
    for metric, gamma, coef0, degree in [("linear", None, None, None),
                                         ("rbf", None, None, None)]:
        kern = PallasKernel(metric, gamma=gamma, coef0=coef0, degree=degree)
        out = jax.block_until_ready(kern(x2, y2, max_tk=128))  # forces 4 K-steps
        _check(out, _reference(metric, x2, y2, gamma, coef0, degree), 1e-4)

    # bf16 inputs: native bf16 MXU path, f32 accumulation/epilogue, bf16 output.
    xb = x.astype(jnp.bfloat16)
    yb = y.astype(jnp.bfloat16)
    kern = PallasKernel("rbf")
    out = jax.block_until_ready(kern(xb, yb))
    assert out.dtype == jnp.bfloat16
    _check(out, _reference("rbf", xb, yb, None, None, None), 2e-2)

    print("KERNEL_OK")
</pallas_src>

<mosaic_0001>
module attributes {stable_mosaic.version = 11 : i64} {
  func.func @_kernel_body(%arg0: i32, %arg1: i32, %arg2: i32, %arg3: memref<128x32xf32, #tpu.memory_space<vmem>>, %arg4: memref<128x32xf32, #tpu.memory_space<vmem>>, %arg5: memref<128x128xf32, #tpu.memory_space<vmem>>, %arg6: memref<128x128xf32, #tpu.memory_space<vmem>>) attributes {dimension_semantics = [#tpu.dimension_semantics<parallel>, #tpu.dimension_semantics<parallel>, #tpu.dimension_semantics<arbitrary>], iteration_bounds = array<i64: 1, 2, 1>, scalar_prefetch = 0 : i64, scratch_operands = 1 : i64, tpu.core_type = #tpu.core_type<tc>, window_params = [{transform_indices = @transform_0, window_bounds = array<i64: 128, 32>}, {transform_indices = @transform_1, window_bounds = array<i64: 128, 32>}, {transform_indices = @transform_2, window_bounds = array<i64: 128, 128>}]} {
    %c0_i32 = arith.constant 0 : i32
    %0 = arith.cmpi eq, %arg2, %c0_i32 : i32
    %1 = arith.extui %0 : i1 to i32
    %c0_i32_0 = arith.constant 0 : i32
    %2 = arith.cmpi ne, %1, %c0_i32_0 : i32
    scf.if %2 {
      %cst_10 = arith.constant 0.000000e+00 : f32
      %12 = vector.broadcast %cst_10 : f32 to vector<128x128xf32>
      %c0_11 = arith.constant 0 : index
      %c0_12 = arith.constant 0 : index
      %13 = vector.load %arg6[%c0_11, %c0_12] : memref<128x128xf32, #tpu.memory_space<vmem>>, vector<128x128xf32>
      tpu.vector_store %arg6[%c0_11, %c0_12], %12 {strides = array<i32>} : memref<128x128xf32, #tpu.memory_space<vmem>>, vector<128x128xf32>,
    } else {
    }
    %c0 = arith.constant 0 : index
    %c0_1 = arith.constant 0 : index
    %3 = vector.load %arg6[%c0, %c0_1] : memref<128x128xf32, #tpu.memory_space<vmem>>, vector<128x128xf32>
    %c0_2 = arith.constant 0 : index
    %c0_3 = arith.constant 0 : index
    %4 = vector.load %arg3[%c0_2, %c0_3] : memref<128x32xf32, #tpu.memory_space<vmem>>, vector<128x32xf32>
    %c0_4 = arith.constant 0 : index
    %c0_5 = arith.constant 0 : index
    %5 = vector.load %arg4[%c0_4, %c0_5] : memref<128x32xf32, #tpu.memory_space<vmem>>, vector<128x32xf32>
    %cst = arith.constant dense<0.000000e+00> : vector<128x128xf32>
    %6 = tpu.matmul %4, %5, %cst {dimension_numbers = #tpu.dot_dimension_numbers<[1], [1], [0], [0], [0, 0, 1, 0], [], []>} : vector<128x32xf32>, vector<128x32xf32>, vector<128x128xf32> -> vector<128x128xf32>
    %7 = arith.addf %3, %6 : vector<128x128xf32>
    %c0_6 = arith.constant 0 : index
    %c0_7 = arith.constant 0 : index
    %8 = vector.load %arg6[%c0_6, %c0_7] : memref<128x128xf32, #tpu.memory_space<vmem>>, vector<128x128xf32>
    tpu.vector_store %arg6[%c0_6, %c0_7], %7 {strides = array<i32>} : memref<128x128xf32, #tpu.memory_space<vmem>>, vector<128x128xf32>,
    %c0_i32_8 = arith.constant 0 : i32
    %9 = arith.cmpi eq, %arg2, %c0_i32_8 : i32
    %10 = arith.extui %9 : i1 to i32
    %c0_i32_9 = arith.constant 0 : i32
    %11 = arith.cmpi ne, %10, %c0_i32_9 : i32
    scf.if %11 {
      %c0_10 = arith.constant 0 : index
      %c0_11 = arith.constant 0 : index
      %12 = vector.load %arg6[%c0_10, %c0_11] : memref<128x128xf32, #tpu.memory_space<vmem>>, vector<128x128xf32>
      %c0_12 = arith.constant 0 : index
      %c0_13 = arith.constant 0 : index
      %13 = vector.load %arg5[%c0_12, %c0_13] : memref<128x128xf32, #tpu.memory_space<vmem>>, vector<128x128xf32>
      tpu.vector_store %arg5[%c0_12, %c0_13], %12 {strides = array<i32>} : memref<128x128xf32, #tpu.memory_space<vmem>>, vector<128x128xf32>,
    } else {
    }
    return
  }
  func.func @transform_0(%arg0: i32, %arg1: i32, %arg2: i32) -> (i32, i32) {
    %c0_i32 = arith.constant 0 : i32
    return %arg0, %arg2 : i32, i32
  }
  func.func @transform_1(%arg0: i32, %arg1: i32, %arg2: i32) -> (i32, i32) {
    %c0_i32 = arith.constant 0 : i32
    return %arg1, %arg2 : i32, i32
  }
  func.func @transform_2(%arg0: i32, %arg1: i32, %arg2: i32) -> (i32, i32) {
    %c0_i32 = arith.constant 0 : i32
    return %arg0, %arg1 : i32, i32
  }
}

</mosaic_0001>

<llo_original>
// kernel: tpu_custom_call.1
$region0: #{tpu_custom_call.1}
  #allocation0 [shape = 'u32[]', space=smem, size = 0x4, offset = 0x4, fixed_abs, tag = 'smem constant byte address 0x4 - core index']
  #allocation1 [shape = 'u32[72,128]{1,0:T(1,128)}', space=vmem, size = 0x9000, scoped, tag = 'internal scratch']
  #allocation2 [shape = 'f32[128,128]{1,0:T(8,128)}', space=vmem, size = 0x10000, scoped, tag = 'scratch operand']
  %s0 = inlined_call_operand.vmem [shape: f32[128,32], index: 0, kind: input, shape index: {}]
  %s1 = inlined_call_operand.vmem [shape: f32[256,32], index: 1, kind: input, shape index: {}]
  %s2 = inlined_call_operand.hbm [shape: f32[128,256], index: 2, kind: output, shape index: {}]
  %s3 = sld [smem:[#allocation0]]
  $region49: #{tpu_custom_call.1} parent=0
    _
  %s5 = ssub.s32 1, %s3
  %s6 = scalar_select 0, %s5, %s3
  $region1: #{tpu_custom_call.1} parent=0
    #allocation3 [shape = 'u8[131072]{0}', space=vmem, size = 0x20000, scoped, tag = 'output window, operand 0']
    #allocation4 [shape = 's32[2]{0}', space=sflag, size = 0x8, scoped, tag = 'scoped memory for tpu_custom_call.1']
    %7 = vsyncpa [#allocation4], 0
    %s8 = scalar_lea.sflag [#allocation4], 1
    %9 = vsyncpa %s8, 0
    loop: start=0, step=1, limit=4
    $region2: #{tpu_custom_call.1} parent=1 // loop_pre_header
      _
    $region3: #{tpu_custom_call.1} parent=1 // loop_header
      %s11 = sphi 0, %s15
      %p12 = scmp.ge.s32.totalorder %s11, 4
      %s18 = sphi 0, %s37
      %s19 = sphi 0, %s33
      %s20 = sphi 0, %s29
      %s21 = sphi 0, %s18
      %s22 = sphi 0, %s19
      %s23 = sphi 0, %s20
      %s24 = sphi 0, %s21
      %s25 = sphi 0, %s22
      %s26 = sphi 0, %s23
      %s42 = sphi 0, %s44
      %s45 = sphi 0, %s42
      %s46 = sphi 0, %s45
      %s62 = sphi 0, %s46
      %s70 = sphi 0, %s72
      %s73 = sphi 0, %s70
      %s74 = sphi 0, %s73
      %s90 = sphi 0, %s74
      %s98 = sphi 0, %s100
      %s101 = sphi 0, %s98
      %s102 = sphi 0, %s101
      %s118 = sphi 0, %s102
    $region4: #{tpu_custom_call.1} parent=1 // loop_header_branch
      %14 = sbr.rel (%p12) target = $region8
    $region5: #{tpu_custom_call.1} parent=1 // loop_body
      %s16 = ssub.s32 %s11, 1
      %s17 = ssub.s32 %s11, 2
      %s27 = sadd.s32 1, %s20
      %p28 = scmp.ge.s32.totalorder %s27, 1
      %s29 = scalar_select %p28, 0, %s27
      %s30 = sadd.s32 1, %s19
      %s31 = scalar_select %p28, %s30, %s19
      %p32 = scmp.ge.s32.totalorder %s31, 2
      %s33 = scalar_select %p32, 0, %s31
      %s34 = sadd.s32 1, %s18
      %s35 = scalar_select %p32, %s34, %s18
      %p36 = scmp.ge.s32.totalorder %s35, 1
      %s37 = scalar_select %p36, 0, %s35
      %s38 = ssub.s32 %s18, %s37
      %s39 = ssub.s32 %s20, %s29
      %s40 = sor.u32 %s38, %s39
      %p41 = scmp.eq.s32.totalorder %s40, 0
      %s43 = sadd.s32 %s42, 1
      %s44 = scalar_select %p41, %s42, %s43
      %p47 = pneg %p41
      %p48 = scmp.eq.s32.totalorder %s11, 1
      %p49 = por %p47, %p48
      %p50 = scmp.ne.s32.totalorder %s42, %s45
      %p51 = scmp.eq.s32.totalorder %s11, 0
      %p52 = por %p50, %p51
      %p53 = scmp.ne.s32.totalorder %s42, %s45
      %p54 = scmp.eq.s32.totalorder %s16, 1
      %p55 = por %p53, %p54
      %p56 = scmp.ne.s32.totalorder %s45, %s46
      %p57 = scmp.eq.s32.totalorder %s16, 0
      %p58 = por %p56, %p57
      %p59 = scmp.ne.s32.totalorder %s45, %s46
      %p60 = scmp.eq.s32.totalorder %s17, 1
      %p61 = por %p59, %p60
      %p63 = scmp.ne.s32.totalorder %s46, %s62
      %p64 = scmp.eq.s32.totalorder %s17, 0
      %p65 = por %p63, %p64
      %s66 = ssub.s32 %s19, %s33
      %s67 = ssub.s32 %s20, %s29
      %s68 = sor.u32 %s66, %s67
      %p69 = scmp.eq.s32.totalorder %s68, 0
      %s71 = sadd.s32 %s70, 1
      %s72 = scalar_select %p69, %s70, %s71
      %p75 = pneg %p69
      %p76 = scmp.eq.s32.totalorder %s11, 1
      %p77 = por %p75, %p76
      %p78 = scmp.ne.s32.totalorder %s70, %s73
      %p79 = scmp.eq.s32.totalorder %s11, 0
      %p80 = por %p78, %p79
      %p81 = scmp.ne.s32.totalorder %s70, %s73
      %p82 = scmp.eq.s32.totalorder %s16, 1
      %p83 = por %p81, %p82
      %p84 = scmp.ne.s32.totalorder %s73, %s74
      %p85 = scmp.eq.s32.totalorder %s16, 0
      %p86 = por %p84, %p85
      %p87 = scmp.ne.s32.totalorder %s73, %s74
      %p88 = scmp.eq.s32.totalorder %s17, 1
      %p89 = por %p87, %p88
      %p91 = scmp.ne.s32.totalorder %s74, %s90
      %p92 = scmp.eq.s32.totalorder %s17, 0
      %p93 = por %p91, %p92
      %s94 = ssub.s32 %s18, %s37
      %s95 = ssub.s32 %s19, %s33
      %s96 = sor.u32 %s94, %s95
      %p97 = scmp.eq.s32.totalorder %s96, 0
      %s99 = sadd.s32 %s98, 1
      %s100 = scalar_select %p97, %s98, %s99
      %p103 = pneg %p97
      %p104 = scmp.eq.s32.totalorder %s11, 1
      %p105 = por %p103, %p104
      %p106 = scmp.ne.s32.totalorder %s98, %s101
      %p107 = scmp.eq.s32.totalorder %s11, 0
      %p108 = por %p106, %p107
      %p109 = scmp.ne.s32.totalorder %s98, %s101
      %p110 = scmp.eq.s32.totalorder %s16, 1
      %p111 = por %p109, %p110
      %p112 = scmp.ne.s32.totalorder %s101, %s102
      %p113 = scmp.eq.s32.totalorder %s16, 0
      %p114 = por %p112, %p113
      %p115 = scmp.ne.s32.totalorder %s101, %s102
      %p116 = scmp.eq.s32.totalorder %s17, 1
      %p117 = por %p115, %p116
      %p119 = scmp.ne.s32.totalorder %s102, %s118
      %p120 = scmp.eq.s32.totalorder %s17, 0
      %p121 = por %p119, %p120
      %p122 = scmp.le.s32.totalorder 1, %s11
      %p123 = scmp.lt.s32.totalorder %s11, 3
      %p124 = pnand %p122, %p123
      %p125 = pneg %p124
      // Predicated region
      $region9: #{tpu_custom_call.1} parent=5 // pred_check
        _
      $region10: #{tpu_custom_call.1} parent=5 // pred_check_branch
        %127 = sbr.rel (%p124) target = $region12
      $region11: #{tpu_custom_call.1} parent=5 // pred_region
        %s128 = ssub.s32 %s11, 1
        // Predicated region
        $region13: #{tpu_custom_call.1} parent=11 // pred_check
          %p129 = pneg %p58
        $region14: #{tpu_custom_call.1} parent=11 // pred_check_branch
          %131 = sbr.rel (%p129) target = $region16
        $region15: #{tpu_custom_call.1} parent=11 // pred_region
          %s132 = smul.u32 16, %s21
          %p133 = scmp.lt.s32.totalorder %s132, 15
          %s134 = scalar_select %p133, %s132, 15
          %p135 = scmp.lt.s32.totalorder %s23, 0
          %s136 = scalar_select %p135, %s23, 0
          %s137 = sadd.s32 %s136, %s134
          %s138 = smul.addr %s137, 8
          %s139 = scalar_lea.vmem %s0, %s138
          %s140 = smul.u32 16, %s21
        $region16: #{tpu_custom_call.1} parent=11 // pred_fallthru
          _
      $region12: #{tpu_custom_call.1} parent=5 // pred_fallthru
        _
      %p141 = scmp.lt.s32.totalorder %s11, 2
      // Predicated region
      $region17: #{tpu_custom_call.1} parent=5 // pred_check
        %p142 = pneg %p141
      $region18: #{tpu_custom_call.1} parent=5 // pred_check_branch
        %144 = sbr.rel (%p142) target = $region20
      $region19: #{tpu_custom_call.1} parent=5 // pred_region
        // Predicated region
        $region21: #{tpu_custom_call.1} parent=19 // pred_check
          %p145 = pneg %p80
        $region22: #{tpu_custom_call.1} parent=19 // pred_check_branch
          %147 = sbr.rel (%p145) target = $region24
        $region23: #{tpu_custom_call.1} parent=19 // pred_region
          %s148 = smul.u32 16, %s19
          %p149 = scmp.lt.s32.totalorder %s148, 31
          %s150 = scalar_select %p149, %s148, 31
          %p151 = scmp.lt.s32.totalorder %s20, 0
          %s152 = scalar_select %p151, %s20, 0
          %s153 = sadd.s32 %s152, %s150
          %s154 = smul.addr %s153, 8
          %s155 = scalar_lea.vmem %s1, %s154
          %s156 = smul.u32 16, %s19
        $region24: #{tpu_custom_call.1} parent=19 // pred_fallthru
          _
      $region20: #{tpu_custom_call.1} parent=5 // pred_fallthru
        _
      %p157 = scmp.le.s32.totalorder 1, %s11
      %p158 = scmp.lt.s32.totalorder %s11, 3
      %p159 = pnand %p157, %p158
      %p160 = pneg %p159
      // Predicated region
      $region25: #{tpu_custom_call.1} parent=5 // pred_check
        _
      $region26: #{tpu_custom_call.1} parent=5 // pred_check_branch
        %162 = sbr.rel (%p159) target = $region28
      $region27: #{tpu_custom_call.1} parent=5 // pred_region
        %s163 = ssub.s32 %s11, 1
        %s164 = smul.u32 16, %s21
        %p165 = scmp.lt.s32.totalorder %s164, 15
        %s166 = scalar_select %p165, %s164, 15
        %p167 = scmp.lt.s32.totalorder %s23, 0
        %s168 = scalar_select %p167, %s23, 0
        %s169 = sadd.s32 %s168, %s166
        %s170 = smul.addr %s169, 8
        %s171 = scalar_lea.vmem %s0, %s170
        %p172 = pneg %p58
        %p173 = pneg %p55
        %s174 = smul.u32 16, %s22
        %p175 = scmp.lt.s32.totalorder %s174, 31
        %s176 = scalar_select %p175, %s174, 31
        %p177 = scmp.lt.s32.totalorder %s23, 0
        %s178 = scalar_select %p177, %s23, 0
        %s179 = sadd.s32 %s178, %s176
        %s180 = smul.addr %s179, 8
        %s181 = scalar_lea.vmem %s1, %s180
        %p182 = pneg %p86
        %p183 = pneg %p83
        %p184 = pneg %p114
        %p185 = pneg %p111
        %s186 = sand.u32 %s101, 1
        %s187 = scalar_lea.sflag [#allocation4], %s186
        %s188 = sand.u32 %s101, 1
        %s189 = smul.addr %s188, 128
        %s190 = scalar_lea.vmem [#allocation3], %s189
        %s191 = smul.u32 16, %s21
        %p192 = scmp.lt.s32.totalorder %s191, 15
        %s193 = scalar_select %p192, %s191, 15
        %p194 = scmp.lt.s32.totalorder %s23, 0
        %s195 = scalar_select %p194, %s23, 0
        %s196 = sadd.s32 %s195, %s193
        %s197 = smul.addr %s196, 8
        %s198 = scalar_lea.vmem %s0, %s197
        %s199 = smul.u32 16, %s21
        %s200 = smul.u32 16, %s22
        %p201 = scmp.lt.s32.totalorder %s200, 31
        %s202 = scalar_select %p201, %s200, 31
        %p203 = scmp.lt.s32.totalorder %s23, 0
        %s204 = scalar_select %p203, %s23, 0
        %s205 = sadd.s32 %s204, %s202
        %s206 = smul.addr %s205, 8
        %s207 = scalar_lea.vmem %s1, %s206
        %s208 = smul.u32 16, %s22
        %s209 = smul.u32 16, %s21
        %p210 = scmp.eq.s32.totalorder %s23, 0
        // Predicated region
        $region29: #{tpu_custom_call.1} parent=27 // pred_check
          %p211 = pneg %p210
        $region30: #{tpu_custom_call.1} parent=27 // pred_check_branch
          %213 = sbr.rel (%p211) target = $region32
        $region31: #{tpu_custom_call.1} parent=27 // pred_region
          %214 = vst [vmem:[#allocation2] sm:$0xff] 0.0
          %215 = vst [vmem:[#allocation2 + $0x8] sm:$0xff] 0.0
          %216 = vst [vmem:[#allocation2 + $0x10] sm:$0xff] 0.0
          %217 = vst [vmem:[#allocation2 + $0x18] sm:$0xff] 0.0
          %218 = vst [vmem:[#allocation2 + $0x20] sm:$0xff] 0.0
          %219 = vst [vmem:[#allocation2 + $0x28] sm:$0xff] 0.0
          %220 = vst [vmem:[#allocation2 + $0x30] sm:$0xff] 0.0
          %221 = vst [vmem:[#allocation2 + $0x38] sm:$0xff] 0.0
          %222 = vst [vmem:[#allocation2 + $0x40] sm:$0xff] 0.0
          %223 = vst [vmem:[#allocation2 + $0x48] sm:$0xff] 0.0
          %224 = vst [vmem:[#allocation2 + $0x50] sm:$0xff] 0.0
          %225 = vst [vmem:[#allocation2 + $0x58] sm:$0xff] 0.0
          %226 = vst [vmem:[#allocation2 + $0x60] sm:$0xff] 0.0
          %227 = vst [vmem:[#allocation2 + $0x68] sm:$0xff] 0.0
          %228 = vst [vmem:[#allocation2 + $0x70] sm:$0xff] 0.0
          %229 = vst [vmem:[#allocation2 + $0x78] sm:$0xff] 0.0
        $region32: #{tpu_custom_call.1} parent=27 // pred_fallthru
          _
        %v230 = vld [vmem:[#allocation2] sm:$0xff]
        %v231 = vld [vmem:[#allocation2 + $0x8] sm:$0xff]
        %v232 = vld [vmem:[#allocation2 + $0x10] sm:$0xff]
        %v233 = vld [vmem:[#allocation2 + $0x18] sm:$0xff]
        %v234 = vld [vmem:[#allocation2 + $0x20] sm:$0xff]
        %v235 = vld [vmem:[#allocation2 + $0x28] sm:$0xff]
        %v236 = vld [vmem:[#allocation2 + $0x30] sm:$0xff]
        %v237 = vld [vmem:[#allocation2 + $0x38] sm:$0xff]
        %v238 = vld [vmem:[#allocation2 + $0x40] sm:$0xff]
        %v239 = vld [vmem:[#allocation2 + $0x48] sm:$0xff]
        %v240 = vld [vmem:[#allocation2 + $0x50] sm:$0xff]
        %v241 = vld [vmem:[#allocation2 + $0x58] sm:$0xff]
        %v242 = vld [vmem:[#allocation2 + $0x60] sm:$0xff]
        %v243 = vld [vmem:[#allocation2 + $0x68] sm:$0xff]
        %v244 = vld [vmem:[#allocation2 + $0x70] sm:$0xff]
        %v245 = vld [vmem:[#allocation2 + $0x78] sm:$0xff]
        %v246 = vld [vmem:[%s198] sm:$0xff]
        %v247 = vld [vmem:[%s198 + $0x8] sm:$0xff]
        %v248 = vld [vmem:[%s198 + $0x10] sm:$0xff]
        %v249 = vld [vmem:[%s198 + $0x18] sm:$0xff]
        %v250 = vld [vmem:[%s198 + $0x20] sm:$0xff]
        %v251 = vld [vmem:[%s198 + $0x28] sm:$0xff]
        %v252 = vld [vmem:[%s198 + $0x30] sm:$0xff]
        %v253 = vld [vmem:[%s198 + $0x38] sm:$0xff]
        %v254 = vld [vmem:[%s198 + $0x40] sm:$0xff]
        %v255 = vld [vmem:[%s198 + $0x48] sm:$0xff]
        %v256 = vld [vmem:[%s198 + $0x50] sm:$0xff]
        %v257 = vld [vmem:[%s198 + $0x58] sm:$0xff]
        %v258 = vld [vmem:[%s198 + $0x60] sm:$0xff]
        %v259 = vld [vmem:[%s198 + $0x68] sm:$0xff]
        %v260 = vld [vmem:[%s198 + $0x70] sm:$0xff]
        %v261 = vld [vmem:[%s198 + $0x78] sm:$0xff]
        %v262 = vld [vmem:[%s207] sm:$0xff]
        %v263 = vld [vmem:[%s207 + $0x8] sm:$0xff]
        %v264 = vld [vmem:[%s207 + $0x10] sm:$0xff]
        %v265 = vld [vmem:[%s207 + $0x18] sm:$0xff]
        %v266 = vld [vmem:[%s207 + $0x20] sm:$0xff]
        %v267 = vld [vmem:[%s207 + $0x28] sm:$0xff]
        %v268 = vld [vmem:[%s207 + $0x30] sm:$0xff]
        %v269 = vld [vmem:[%s207 + $0x38] sm:$0xff]
        %v270 = vld [vmem:[%s207 + $0x40] sm:$0xff]
        %v271 = vld [vmem:[%s207 + $0x48] sm:$0xff]
        %v272 = vld [vmem:[%s207 + $0x50] sm:$0xff]
        %v273 = vld [vmem:[%s207 + $0x58] sm:$0xff]
        %v274 = vld [vmem:[%s207 + $0x60] sm:$0xff]
        %v275 = vld [vmem:[%s207 + $0x68] sm:$0xff]
        %v276 = vld [vmem:[%s207 + $0x70] sm:$0xff]
        %v277 = vld [vmem:[%s207 + $0x78] sm:$0xff]
        %vm278 = vcmask 261120
        %v280 = vsel %vm278, %v246, 0
        %v283 = vsel %vm278, %v247, 0
        %v286 = vsel %vm278, %v248, 0
        %v289 = vsel %vm278, %v249, 0
        %v292 = vsel %vm278, %v250, 0
        %v295 = vsel %vm278, %v251, 0
        %v298 = vsel %vm278, %v252, 0
        %v301 = vsel %vm278, %v253, 0
        %v304 = vsel %vm278, %v254, 0
        %v307 = vsel %vm278, %v255, 0
        %v310 = vsel %vm278, %v256, 0
        %v313 = vsel %vm278, %v257, 0
        %v316 = vsel %vm278, %v258, 0
        %v319 = vsel %vm278, %v259, 0
        %v322 = vsel %vm278, %v260, 0
        %v325 = vsel %vm278, %v261, 0
        %v328 = vsel %vm278, %v262, 0
        %v331 = vsel %vm278, %v263, 0
        %v334 = vsel %vm278, %v264, 0
        %v337 = vsel %vm278, %v265, 0
        %v340 = vsel %vm278, %v266, 0
        %v343 = vsel %vm278, %v267, 0
        %v346 = vsel %vm278, %v268, 0
        %v349 = vsel %vm278, %v269, 0
        %v352 = vsel %vm278, %v270, 0
        %v355 = vsel %vm278, %v271, 0
        %v358 = vsel %vm278, %v272, 0
        %v361 = vsel %vm278, %v273, 0
        %v364 = vsel %vm278, %v274, 0
        %v367 = vsel %vm278, %v275, 0
        %v370 = vsel %vm278, %v276, 0
        %v373 = vsel %vm278, %v277, 0
        %375 = vmatpush.xpose.msra.mxu0 %v373
        %376 = vmatpush.xpose.msra.mxu0 %v370
        %377 = vmatpush.xpose.msra.mxu0 %v367
        %378 = vmatpush.xpose.msra.mxu0 %v364
        %379 = vmatpush.xpose.msra.mxu0 %v361
        %380 = vmatpush.xpose.msra.mxu0 %v358
        %381 = vmatpush.xpose.msra.mxu0 %v355
        %382 = vmatpush.xpose.msra.mxu0 %v352
        %383 = vmatpush.xpose.msra.mxu0 %v349
        %384 = vmatpush.xpose.msra.mxu0 %v346
        %385 = vmatpush.xpose.msra.mxu0 %v343
        %386 = vmatpush.xpose.msra.mxu0 %v340
        %387 = vmatpush.xpose.msra.mxu0 %v337
        %388 = vmatpush.xpose.msra.mxu0 %v334
        %389 = vmatpush.xpose.msra.mxu0 %v331
        %390 = vmatpush.xpose.msra.mxu0 %v328
        %391 = vmatmul.f32.gmra.mxu0 %v280
        %v392 = vpop.f32.mrf.mxu0
        %v393 = vadd.f32 0.0, %v392
        %394 = vmatmul.f32.gmra.mxu0 %v283
        %v395 = vpop.f32.mrf.mxu0
        %v396 = vadd.f32 0.0, %v395
        %397 = vmatmul.f32.gmra.mxu0 %v286
        %v398 = vpop.f32.mrf.mxu0
        %v399 = vadd.f32 0.0, %v398
        %400 = vmatmul.f32.gmra.mxu0 %v289
        %v401 = vpop.f32.mrf.mxu0
        %v402 = vadd.f32 0.0, %v401
        %403 = vmatmul.f32.gmra.mxu0 %v292
        %v404 = vpop.f32.mrf.mxu0
        %v405 = vadd.f32 0.0, %v404
        %406 = vmatmul.f32.gmra.mxu0 %v295
        %v407 = vpop.f32.mrf.mxu0
        %v408 = vadd.f32 0.0, %v407
        %409 = vmatmul.f32.gmra.mxu0 %v298
        %v410 = vpop.f32.mrf.mxu0
        %v411 = vadd.f32 0.0, %v410
        %412 = vmatmul.f32.gmra.mxu0 %v301
        %v413 = vpop.f32.mrf.mxu0
        %v414 = vadd.f32 0.0, %v413
        %415 = vmatmul.f32.gmra.mxu0 %v304
        %v416 = vpop.f32.mrf.mxu0
        %v417 = vadd.f32 0.0, %v416
        %418 = vmatmul.f32.gmra.mxu0 %v307
        %v419 = vpop.f32.mrf.mxu0
        %v420 = vadd.f32 0.0, %v419
        %421 = vmatmul.f32.gmra.mxu0 %v310
        %v422 = vpop.f32.mrf.mxu0
        %v423 = vadd.f32 0.0, %v422
        %424 = vmatmul.f32.gmra.mxu0 %v313
        %v425 = vpop.f32.mrf.mxu0
        %v426 = vadd.f32 0.0, %v425
        %427 = vmatmul.f32.gmra.mxu0 %v316
        %v428 = vpop.f32.mrf.mxu0
        %v429 = vadd.f32 0.0, %v428
        %430 = vmatmul.f32.gmra.mxu0 %v319
        %v431 = vpop.f32.mrf.mxu0
        %v432 = vadd.f32 0.0, %v431
        %433 = vmatmul.f32.gmra.mxu0 %v322
        %v434 = vpop.f32.mrf.mxu0
        %v435 = vadd.f32 0.0, %v434
        %436 = vmatmul.f32.gmra.mxu0 %v325
        %v437 = vpop.f32.mrf.mxu0
        %v438 = vadd.f32 0.0, %v437
        %439 = vdwg.mxu0
        %v440 = vadd.f32 %v230, %v393
        %v441 = vadd.f32 %v231, %v396
        %v442 = vadd.f32 %v232, %v399
        %v443 = vadd.f32 %v233, %v402
        %v444 = vadd.f32 %v234, %v405
        %v445 = vadd.f32 %v235, %v408
        %v446 = vadd.f32 %v236, %v411
        %v447 = vadd.f32 %v237, %v414
        %v448 = vadd.f32 %v238, %v417
        %v449 = vadd.f32 %v239, %v420
        %v450 = vadd.f32 %v240, %v423
        %v451 = vadd.f32 %v241, %v426
        %v452 = vadd.f32 %v242, %v429
        %v453 = vadd.f32 %v243, %v432
        %v454 = vadd.f32 %v244, %v435
        %v455 = vadd.f32 %v245, %v438
        %456 = vst [vmem:[#allocation2] sm:$0xff] %v440
        %457 = vst [vmem:[#allocation2 + $0x8] sm:$0xff] %v441
        %458 = vst [vmem:[#allocation2 + $0x10] sm:$0xff] %v442
        %459 = vst [vmem:[#allocation2 + $0x18] sm:$0xff] %v443
        %460 = vst [vmem:[#allocation2 + $0x20] sm:$0xff] %v444
        %461 = vst [vmem:[#allocation2 + $0x28] sm:$0xff] %v445
        %462 = vst [vmem:[#allocation2 + $0x30] sm:$0xff] %v446
        %463 = vst [vmem:[#allocation2 + $0x38] sm:$0xff] %v447
        %464 = vst [vmem:[#allocation2 + $0x40] sm:$0xff] %v448
        %465 = vst [vmem:[#allocation2 + $0x48] sm:$0xff] %v449
        %466 = vst [vmem:[#allocation2 + $0x50] sm:$0xff] %v450
        %467 = vst [vmem:[#allocation2 + $0x58] sm:$0xff] %v451
        %468 = vst [vmem:[#allocation2 + $0x60] sm:$0xff] %v452
        %469 = vst [vmem:[#allocation2 + $0x68] sm:$0xff] %v453
        %470 = vst [vmem:[#allocation2 + $0x70] sm:$0xff] %v454
        %471 = vst [vmem:[#allocation2 + $0x78] sm:$0xff] %v455
        // Predicated region
        $region33: #{tpu_custom_call.1} parent=27 // pred_check
          %p472 = pneg %p210
        $region34: #{tpu_custom_call.1} parent=27 // pred_check_branch
          %474 = sbr.rel (%p472) target = $region36
        $region35: #{tpu_custom_call.1} parent=27 // pred_region
          %v475 = vld [vmem:[#allocation2] sm:$0xff]
          %v476 = vld [vmem:[#allocation2 + $0x8] sm:$0xff]
          %v477 = vld [vmem:[#allocation2 + $0x10] sm:$0xff]
          %v478 = vld [vmem:[#allocation2 + $0x18] sm:$0xff]
          %v479 = vld [vmem:[#allocation2 + $0x20] sm:$0xff]
          %v480 = vld [vmem:[#allocation2 + $0x28] sm:$0xff]
          %v481 = vld [vmem:[#allocation2 + $0x30] sm:$0xff]
          %v482 = vld [vmem:[#allocation2 + $0x38] sm:$0xff]
          %v483 = vld [vmem:[#allocation2 + $0x40] sm:$0xff]
          %v484 = vld [vmem:[#allocation2 + $0x48] sm:$0xff]
          %v485 = vld [vmem:[#allocation2 + $0x50] sm:$0xff]
          %v486 = vld [vmem:[#allocation2 + $0x58] sm:$0xff]
          %v487 = vld [vmem:[#allocation2 + $0x60] sm:$0xff]
          %v488 = vld [vmem:[#allocation2 + $0x68] sm:$0xff]
          %v489 = vld [vmem:[#allocation2 + $0x70] sm:$0xff]
          %v490 = vld [vmem:[#allocation2 + $0x78] sm:$0xff]
          %491 = vst [vmem:[%s190] sm:$0xff] %v475
          %492 = vst [vmem:[%s190 + $0x8] sm:$0xff] %v476
          %493 = vst [vmem:[%s190 + $0x10] sm:$0xff] %v477
          %494 = vst [vmem:[%s190 + $0x18] sm:$0xff] %v478
          %495 = vst [vmem:[%s190 + $0x20] sm:$0xff] %v479
          %496 = vst [vmem:[%s190 + $0x28] sm:$0xff] %v480
          %497 = vst [vmem:[%s190 + $0x30] sm:$0xff] %v481
          %498 = vst [vmem:[%s190 + $0x38] sm:$0xff] %v482
          %499 = vst [vmem:[%s190 + $0x40] sm:$0xff] %v483
          %500 = vst [vmem:[%s190 + $0x48] sm:$0xff] %v484
          %501 = vst [vmem:[%s190 + $0x50] sm:$0xff] %v485
          %502 = vst [vmem:[%s190 + $0x58] sm:$0xff] %v486
          %503 = vst [vmem:[%s190 + $0x60] sm:$0xff] %v487
          %504 = vst [vmem:[%s190 + $0x68] sm:$0xff] %v488
          %505 = vst [vmem:[%s190 + $0x70] sm:$0xff] %v489
          %506 = vst [vmem:[%s190 + $0x78] sm:$0xff] %v490
        $region36: #{tpu_custom_call.1} parent=27 // pred_fallthru
          _
        %s507 = sand.u32 %s101, 1
        %s508 = scalar_lea.sflag [#allocation4], %s507
        %s509 = sand.u32 %s101, 1
        %s510 = smul.addr %s509, 128
        %s511 = scalar_lea.vmem [#allocation3], %s510
        // Predicated region
        $region37: #{tpu_custom_call.1} parent=27 // pred_check
          %p512 = pneg %p111
        $region38: #{tpu_custom_call.1} parent=27 // pred_check_branch
          %514 = sbr.rel (%p512) target = $region40
        $region39: #{tpu_custom_call.1} parent=27 // pred_region
          %s515 = smul.u32 16, %s21
          %517 = vsyncadd %s508, 0
          %s518 = smul.addr %s515, 2
          %s519 = sadd.s32 %s22, %s518
          %s520 = smul.addr %s519, 8
          %s521 = scalar_lea.hbm %s2, %s520
          %s522 = sshll.u32 %s511, 4
          %s523 = int_to_ptr.vmem [resolvable:$true] %s522
          %s524 = sshll.u32 %s521, 4
          %s525 = int_to_ptr.hbm [resolvable:$true] %s524
          %530 = dma.vmem_to_hbm [thread:$0]  %s523, 2048, %s525, %s508, 128, 256, 8
        $region40: #{tpu_custom_call.1} parent=27 // pred_fallthru
          _
      $region28: #{tpu_custom_call.1} parent=5 // pred_fallthru
        _
      %p531 = scmp.le.s32.totalorder 2, %s11
      // Predicated region
      $region41: #{tpu_custom_call.1} parent=5 // pred_check
        %p532 = pneg %p531
      $region42: #{tpu_custom_call.1} parent=5 // pred_check_branch
        %534 = sbr.rel (%p532) target = $region44
      $region43: #{tpu_custom_call.1} parent=5 // pred_region
        %s535 = ssub.s32 %s11, 2
        // Predicated region
        $region45: #{tpu_custom_call.1} parent=43 // pred_check
          %p536 = pneg %p117
        $region46: #{tpu_custom_call.1} parent=43 // pred_check_branch
          %538 = sbr.rel (%p536) target = $region48
        $region47: #{tpu_custom_call.1} parent=43 // pred_region
          %s539 = sand.u32 %s102, 1
          %s540 = scalar_lea.sflag [#allocation4], %s539
          %s541 = sand.u32 %s102, 1
          %s542 = smul.addr %s541, 128
          %s543 = scalar_lea.vmem [#allocation3], %s542
          %545 = dma.done %s540, 2048
        $region48: #{tpu_custom_call.1} parent=43 // pred_fallthru
          _
      $region44: #{tpu_custom_call.1} parent=5 // pred_fallthru
        _
    $region6: #{tpu_custom_call.1} parent=1 // loop_footer
      %s15 = sadd.s32 1, %s11
    $region7: #{tpu_custom_call.1} parent=1 // loop_footer_branch
      %10 = sbr.rel target = $region3
    $region8: #{tpu_custom_call.1} parent=1 // loop_exit
      _
    %546 = vsyncpa [#allocation4], 1
    %s547 = scalar_lea.sflag [#allocation4], 1
    %548 = vsyncpa %s547, 1

</llo_original>
